<compile_context>
chip_gen: v7x
topology: tpu7x:2x2x1
jax: 0.10.0
libtpu: 0.0.40
codegen_flags: <defaults>
</compile_context>

<pallas_src>
import jax
import jax.numpy as jnp
from jax import lax
from jax.experimental import pallas as pl
from jax.experimental.pallas import tpu as pltpu

_LANE = 128                     # lane width of the flattened slab (single vreg wide)
_TARGET_BLOCK_BYTES = 4 << 20   # ~4 MiB per ref per grid step
_MIN_GRID_STEPS = 4             # aim for >= 4 steps so both v7x TCs get work


def _round_up(x, m):
    return ((x + m - 1) // m) * m


def _cdiv(a, b):
    return -(-a // b)


def _complex_mul_kernel(a_ref, b_ref, o_ref):
    a = a_ref[...]
    b = b_ref[...]
    # HBM-bound kernel: upcasting narrow dtypes to f32 for the math is free
    # and matches an f32 reference more closely.
    if a.dtype.itemsize < 4:
        a = a.astype(jnp.float32)
        b = b.astype(jnp.float32)
    lanes = a.shape[-1]

    # Lane-parity mask as a single (1, lanes) row; jnp.where broadcasts it.
    lane_idx = lax.broadcasted_iota(jnp.int32, (1, lanes), 1)
    is_re = (lane_idx & 1) == 0  # even lanes = real, odd lanes = imag

    # roll(x, shift=lanes-1)[i] == x[i+1]; roll(x, shift=1)[i] == x[i-1].
    # All rolls are along a 128-lane axis -> single-vreg lane rotations.
    b_next = pltpu.roll(b, shift=lanes - 1, axis=1)
    b_prev = pltpu.roll(b, shift=1, axis=1)
    # Pairwise (re <-> im) swap of b within each adjacent lane pair:
    #   [br, bi, br, bi, ...] -> [bi, br, bi, br, ...]
    b_swap = jnp.where(is_re, b_next, b_prev)

    c = a * b       # even lanes: ar*br ; odd lanes: ai*bi
    d = a * b_swap  # even lanes: ar*bi ; odd lanes: ai*br

    # real (valid at even lanes): c[2k]   - c[2k+1] = ar*br - ai*bi
    # imag (valid at odd  lanes): d[2k+1] + d[2k]   = ai*br + ar*bi
    real = c - pltpu.roll(c, shift=lanes - 1, axis=1)
    imag = d + pltpu.roll(d, shift=1, axis=1)

    o_ref[...] = jnp.where(is_re, real, imag).astype(o_ref.dtype)


def complex_multiply(a, b):
    """a, b: arrays of shape [..., 2] (last dim = [real, imag])."""
    assert a.shape == b.shape, "a and b must have the same shape"
    assert a.dtype == b.dtype, "a and b must have the same dtype"
    assert a.shape[-1] == 2, "last dim must be 2 (real, imag)"
    # Re/Im pairing relies on an even, 128-multiple row width.
    assert _LANE % 128 == 0 and _LANE % 2 == 0

    orig_shape = a.shape
    dtype = a.dtype
    total = a.size  # interleaved re/im element count = 2 * prod(leading dims)

    if total == 0:
        return jnp.zeros(orig_shape, dtype=dtype)

    itemsize = jnp.dtype(dtype).itemsize
    # Native packed-tile sublane multiple: 8 for f32, 16 for bf16, 32 for 8-bit.
    sub_mult = max(8, 32 // itemsize)

    rows = _cdiv(total, _LANE)

    a_flat = a.reshape(-1)
    b_flat = b.reshape(-1)
    needs_pad = rows * _LANE != total
    if needs_pad:
        # Known extra-HBM-pass cost; only hit when total % 128 != 0.
        pad = rows * _LANE - total
        a_flat = jnp.pad(a_flat, (0, pad))
        b_flat = jnp.pad(b_flat, (0, pad))

    # Contiguous reshape: re/im pairs stay in adjacent lanes of each row
    # (row width is even), real parts always land on even lanes.
    a2 = a_flat.reshape(rows, _LANE)
    b2 = b_flat.reshape(rows, _LANE)

    if rows <= sub_mult:
        # Single block covering the full array (allowed even if rows < 8).
        block_rows = rows
    else:
        max_block_rows = max(
            sub_mult,
            (_TARGET_BLOCK_BYTES // (_LANE * itemsize)) // sub_mult * sub_mult,
        )
        block_rows = min(
            max_block_rows,
            _round_up(_cdiv(rows, _MIN_GRID_STEPS), sub_mult),
        )
    num_blocks = _cdiv(rows, block_rows)  # ragged last block handled by Pallas

    spec = pl.BlockSpec((block_rows, _LANE), lambda i: (i, 0))

    cost = pl.CostEstimate(
        flops=3 * total,                      # 6 flops per complex pair = 3 * total
        transcendentals=0,
        bytes_accessed=3 * total * itemsize,  # read a + read b + write out
    )

    out2 = pl.pallas_call(
        _complex_mul_kernel,
        out_shape=jax.ShapeDtypeStruct((rows, _LANE), dtype),
        grid=(num_blocks,),
        in_specs=[spec, spec],
        out_specs=spec,
        compiler_params=pltpu.CompilerParams(
            dimension_semantics=("parallel",),
            vmem_limit_bytes=40 << 20,  # covers 3 refs x 2 bufs x 4 MiB on v5e too
        ),
        cost_estimate=cost,
    )(a2, b2)

    out_flat = out2.reshape(-1)
    if needs_pad:
        out_flat = out_flat[:total]
    return out_flat.reshape(orig_shape)


def _reference(a, b):
    real = a[..., 0] * b[..., 0] - a[..., 1] * b[..., 1]
    imag = a[..., 0] * b[..., 1] + a[..., 1] * b[..., 0]
    return jnp.stack([real, imag], axis=-1)


if __name__ == "__main__":
    key = jax.random.PRNGKey(0)
    k_a, k_b = jax.random.split(key)

    # Small shapes consistent with the module: batch=2, seq=8, hidden=32,
    # trailing complex dim = 2.
    shape = (2, 8, 32, 2)
    a = jax.random.normal(k_a, shape, dtype=jnp.float32)
    b = jax.random.normal(k_b, shape, dtype=jnp.float32)

    out = complex_multiply(a, b)
    out = jax.block_until_ready(out)

    ref = _reference(a, b)
    assert out.shape == ref.shape, (out.shape, ref.shape)
    assert jnp.allclose(out, ref, atol=1e-6, rtol=1e-6), "mismatch vs reference"

    print("KERNEL_OK")
</pallas_src>

<mosaic_0001>
module attributes {stable_mosaic.version = 11 : i64} {
  func.func @_complex_mul_kernel(%arg0: i32, %arg1: memref<8x128xf32, #tpu.memory_space<vmem>>, %arg2: memref<8x128xf32, #tpu.memory_space<vmem>>, %arg3: memref<8x128xf32, #tpu.memory_space<vmem>>) attributes {dimension_semantics = [#tpu.dimension_semantics<parallel>], iteration_bounds = array<i64: 1>, scalar_prefetch = 0 : i64, scratch_operands = 0 : i64, tpu.core_type = #tpu.core_type<tc>, window_params = [{transform_indices = @transform_0, window_bounds = array<i64: 8, 128>}, {transform_indices = @transform_1, window_bounds = array<i64: 8, 128>}, {transform_indices = @transform_2, window_bounds = array<i64: 8, 128>}]} {
    %c0 = arith.constant 0 : index
    %c0_0 = arith.constant 0 : index
    %0 = vector.load %arg1[%c0, %c0_0] : memref<8x128xf32, #tpu.memory_space<vmem>>, vector<8x128xf32>
    %c0_1 = arith.constant 0 : index
    %c0_2 = arith.constant 0 : index
    %1 = vector.load %arg2[%c0_1, %c0_2] : memref<8x128xf32, #tpu.memory_space<vmem>>, vector<8x128xf32>
    %2 = tpu.iota {dimensions = array<i32: 1>} : vector<1x128xi32>
    %c1_i32 = arith.constant 1 : i32
    %3 = vector.broadcast %c1_i32 : i32 to vector<1x128xi32>
    %4 = arith.andi %2, %3 : vector<1x128xi32>
    %c0_i32 = arith.constant 0 : i32
    %5 = vector.broadcast %c0_i32 : i32 to vector<1x128xi32>
    %6 = arith.cmpi eq, %4, %5 : vector<1x128xi32>
    %c127_i32 = arith.constant 127 : i32
    %7 = tpu.dynamic_rotate %1 by %c127_i32 dim 1 : vector<8x128xf32>, i32 -> vector<8x128xf32>
    %c1_i32_3 = arith.constant 1 : i32
    %8 = tpu.dynamic_rotate %1 by %c1_i32_3 dim 1 : vector<8x128xf32>, i32 -> vector<8x128xf32>
    %9 = vector.shape_cast %6 : vector<1x128xi1> to vector<1x128xi1>
    %10 = vector.broadcast %9 : vector<1x128xi1> to vector<8x128xi1>
    %11 = arith.select %10, %7, %8 : vector<8x128xi1>, vector<8x128xf32>
    %12 = arith.mulf %0, %1 : vector<8x128xf32>
    %13 = arith.mulf %0, %11 : vector<8x128xf32>
    %c127_i32_4 = arith.constant 127 : i32
    %14 = tpu.dynamic_rotate %12 by %c127_i32_4 dim 1 : vector<8x128xf32>, i32 -> vector<8x128xf32>
    %15 = arith.subf %12, %14 : vector<8x128xf32>
    %c1_i32_5 = arith.constant 1 : i32
    %16 = tpu.dynamic_rotate %13 by %c1_i32_5 dim 1 : vector<8x128xf32>, i32 -> vector<8x128xf32>
    %17 = arith.addf %13, %16 : vector<8x128xf32>
    %18 = vector.shape_cast %6 : vector<1x128xi1> to vector<1x128xi1>
    %19 = vector.broadcast %18 : vector<1x128xi1> to vector<8x128xi1>
    %20 = arith.select %19, %15, %17 : vector<8x128xi1>, vector<8x128xf32>
    %c0_6 = arith.constant 0 : index
    %c0_7 = arith.constant 0 : index
    %21 = vector.load %arg3[%c0_6, %c0_7] : memref<8x128xf32, #tpu.memory_space<vmem>>, vector<8x128xf32>
    tpu.vector_store %arg3[%c0_6, %c0_7], %20 {strides = array<i32>} : memref<8x128xf32, #tpu.memory_space<vmem>>, vector<8x128xf32>,
    return
  }
  func.func @transform_0(%arg0: i32) -> (i32, i32) {
    %c0_i32 = arith.constant 0 : i32
    %c0_i32_0 = arith.constant 0 : i32
    return %arg0, %c0_i32 : i32, i32
  }
  func.func @transform_1(%arg0: i32) -> (i32, i32) {
    %c0_i32 = arith.constant 0 : i32
    %c0_i32_0 = arith.constant 0 : i32
    return %arg0, %c0_i32 : i32, i32
  }
  func.func @transform_2(%arg0: i32) -> (i32, i32) {
    %c0_i32 = arith.constant 0 : i32
    %c0_i32_0 = arith.constant 0 : i32
    return %arg0, %c0_i32 : i32, i32
  }
}

</mosaic_0001>

<llo_original>
// kernel: tpu_custom_call.1
$region0: #{tpu_custom_call.1}
  #allocation0 [shape = 'u32[]', space=smem, size = 0x4, offset = 0x4, fixed_abs, tag = 'smem constant byte address 0x4 - core index']
  #allocation1 [shape = 'u32[144,128]{1,0:T(1,128)}', space=vmem, size = 0x12000, scoped, tag = 'internal scratch']
  %s0 = inlined_call_operand.hbm [shape: f32[8,128], index: 0, kind: input, shape index: {}]
  %s1 = inlined_call_operand.hbm [shape: f32[8,128], index: 1, kind: input, shape index: {}]
  %s2 = inlined_call_operand.hbm [shape: f32[8,128], index: 2, kind: output, shape index: {}]
  %s3 = sld [smem:[#allocation0]]
  $region26: #{tpu_custom_call.1} parent=0
    _
  %s5 = ssub.s32 1, %s3
  %s6 = scalar_select 0, %s5, %s3
  $region1: #{tpu_custom_call.1} parent=0
    #allocation2 [shape = 'u8[4096]{0}', space=vmem, size = 0x1000, scoped, tag = 'input window, operand 0, single buffered']
    #allocation3 [shape = 's32[1]{0}', space=sflag, size = 0x4, scoped, tag = 'scoped memory for tpu_custom_call.1']
    #allocation4 [shape = 's32[1]{0}', space=sflag, size = 0x4, scoped, tag = 'scoped memory for tpu_custom_call.1']
    #allocation5 [shape = 'u8[4096]{0}', space=vmem, size = 0x1000, scoped, tag = 'input window, operand 1, single buffered']
    #allocation6 [shape = 's32[1]{0}', space=sflag, size = 0x4, scoped, tag = 'scoped memory for tpu_custom_call.1']
    #allocation7 [shape = 'u8[4096]{0}', space=vmem, size = 0x1000, scoped, tag = 'output window, operand 0, single buffered']
    %7 = vsyncpa [#allocation3], 0
    %8 = vsyncpa [#allocation6], 0
    %9 = vsyncpa [#allocation4], 0
    // Predicated region
    $region2: #{tpu_custom_call.1} parent=1 // pred_check
      _
    $region3: #{tpu_custom_call.1} parent=1 // pred_check_branch
      %11 = sbr.rel (0) target = $region5
    $region4: #{tpu_custom_call.1} parent=1 // pred_region
      %s13 = ssub.s32 128, 128
      %14 = vsyncadd [#allocation3], %s13
      %s16 = sshll.u32 [#allocation2], 4
      %s17 = int_to_ptr.vmem [resolvable:$true] %s16
      %19 = dma.hbm_to_vmem [thread:$0]  %s0, 128, %s17, [#allocation3]
    $region5: #{tpu_custom_call.1} parent=1 // pred_fallthru
      _
    // Predicated region
    $region6: #{tpu_custom_call.1} parent=1 // pred_check
      _
    $region7: #{tpu_custom_call.1} parent=1 // pred_check_branch
      %21 = sbr.rel (0) target = $region9
    $region8: #{tpu_custom_call.1} parent=1 // pred_region
      %s23 = ssub.s32 128, 128
      %24 = vsyncadd [#allocation6], %s23
      %s26 = sshll.u32 [#allocation5], 4
      %s27 = int_to_ptr.vmem [resolvable:$true] %s26
      %29 = dma.hbm_to_vmem [thread:$0]  %s1, 128, %s27, [#allocation6]
    $region9: #{tpu_custom_call.1} parent=1 // pred_fallthru
      _
    // Predicated region
    $region10: #{tpu_custom_call.1} parent=1 // pred_check
      _
    $region11: #{tpu_custom_call.1} parent=1 // pred_check_branch
      %31 = sbr.rel (0) target = $region13
    $region12: #{tpu_custom_call.1} parent=1 // pred_region
      %32 = dma.done [#allocation3], 128
    $region13: #{tpu_custom_call.1} parent=1 // pred_fallthru
      _
    // Predicated region
    $region14: #{tpu_custom_call.1} parent=1 // pred_check
      _
    $region15: #{tpu_custom_call.1} parent=1 // pred_check_branch
      %34 = sbr.rel (0) target = $region17
    $region16: #{tpu_custom_call.1} parent=1 // pred_region
      %35 = dma.done [#allocation6], 128
    $region17: #{tpu_custom_call.1} parent=1 // pred_fallthru
      _
    %v36 = vld [vmem:[#allocation2] sm:$0xff]
    %v37 = vld [vmem:[#allocation5] sm:$0xff]
    %v38 = vlaneseq
    %v39 = vand.u32 %v38, 127
    %v40 = vand.u32 %v39, 1
    %vm41 = vcmp.eq.s32.totalorder %v40, 0
    %42 = vrot.lane.b32.xlu0 %v37, 127
    %v43 = vpop.permute.xlu0 %42
    %44 = vrot.lane.b32.xlu0 %v37, 1
    %v45 = vpop.permute.xlu0 %44
    %v46 = vsel %vm41, 1, 0
    %vm47 = vcmp.eq.s32.totalorder %v46, 1
    %v48 = vsel %vm47, %v43, %v45
    %v49 = vmul.f32 %v36, %v37
    %v50 = vmul.f32 %v36, %v48
    %51 = vrot.lane.b32.xlu0 %v49, 127
    %v52 = vpop.permute.xlu0 %51
    %v53 = vsub.f32 %v49, %v52
    %54 = vrot.lane.b32.xlu0 %v50, 1
    %v55 = vpop.permute.xlu0 %54
    %v56 = vadd.f32 %v50, %v55
    %v57 = vsel %vm47, %v53, %v56
    %58 = vst [vmem:[#allocation7] sm:$0xff] %v57
    // Predicated region
    $region18: #{tpu_custom_call.1} parent=1 // pred_check
      _
    $region19: #{tpu_custom_call.1} parent=1 // pred_check_branch
      %60 = sbr.rel (0) target = $region21
    $region20: #{tpu_custom_call.1} parent=1 // pred_region
      %s62 = ssub.s32 128, 128
      %63 = vsyncadd [#allocation4], %s62
      %s65 = sshll.u32 [#allocation7], 4
      %s66 = int_to_ptr.vmem [resolvable:$true] %s65
      %68 = dma.vmem_to_hbm [thread:$0]  %s66, 128, %s2, [#allocation4]
    $region21: #{tpu_custom_call.1} parent=1 // pred_fallthru
      _
    // Predicated region
    $region22: #{tpu_custom_call.1} parent=1 // pred_check
      _
    $region23: #{tpu_custom_call.1} parent=1 // pred_check_branch
      %70 = sbr.rel (0) target = $region25
    $region24: #{tpu_custom_call.1} parent=1 // pred_region
      %71 = dma.done [#allocation4], 128
    $region25: #{tpu_custom_call.1} parent=1 // pred_fallthru
      _
    %72 = vsyncpa [#allocation3], 1
    %73 = vsyncpa [#allocation6], 1
    %74 = vsyncpa [#allocation4], 1

</llo_original>
